<compile_context>
chip_gen: v5e
topology: v5e:2x2
jax: 0.10.0
libtpu: 0.0.40
codegen_flags: <defaults>
</compile_context>

<pallas_src>
import numpy as np
import jax
import jax.numpy as jnp
from jax import lax
from jax.experimental import pallas as pl
from jax.experimental.pallas import tpu as pltpu


def _elpa_kernel(x_ref, xe_ref, we_ref, w3_ref, w4_ref, out_ref):
    f32 = jnp.float32
    bf16 = jnp.bfloat16
    nb = x_ref.shape[0]

    # Weights were cast to bf16 once in the wrapper; hoisted out of the loop.
    we = we_ref[...].astype(bf16)          # (C, Ce)
    w3 = w3_ref[...].astype(bf16)          # (C, C)
    w4 = w4_ref[...].astype(bf16)          # (C, C)

    def body(b, carry):
        # Dynamic first-axis ref indexing keeps per-iteration vreg pressure
        # bounded (vs. a static Python unroll which spills at nb >= ~4).
        x = x_ref[b].astype(bf16)          # (C, HWp)  channels on sublanes, HW on lanes
        xe = xe_ref[b].astype(bf16)        # (Ce, HWp)

        # Gate: sigmoid(kedge(x_edge)).  exp is EUP work, free next to the MXU.
        z = jnp.dot(we, xe, preferred_element_type=f32)        # (C, HWp) f32
        gate = 1.0 / (1.0 + jnp.exp(-z))                       # exact sigmoid

        # k3(x) * gate, then k4(.) -- MXU matmuls with f32 accumulation.
        t = jnp.dot(w3, x, preferred_element_type=f32)          # (C, HWp) f32
        m = (t * gate).astype(bf16)
        out = jnp.dot(w4, m, preferred_element_type=f32)        # (C, HWp) f32

        out_ref[b] = out.astype(out_ref.dtype)
        return carry

    lax.fori_loop(0, nb, body, 0)


def elpa_attention_branch_pallas(x, x_edge, params, *, batch_block=None):
    """x: (N, C, H, W), x_edge: (N, 4, H, W); 1x1 bias-free conv weights in params.

    Output dtype matches x.dtype.  Pass bf16 inputs for halved HBM traffic.
    """
    N, C, H, W = x.shape
    Ce = x_edge.shape[1]
    HW = H * W
    out_dtype = x.dtype

    # --- lane-density guard: keep the lane axis a multiple of 128 -----------
    HWp = ((HW + 127) // 128) * 128
    x_flat = x.reshape(N, C, HW)            # free reshape for contiguous NCHW
    xe_flat = x_edge.reshape(N, Ce, HW)
    if HWp != HW:
        pad = HWp - HW
        x_flat = jnp.pad(x_flat, ((0, 0), (0, 0), (0, pad)))
        xe_flat = jnp.pad(xe_flat, ((0, 0), (0, 0), (0, pad)))

    # --- batch_block: amortize per-step overhead, keep >=2 steps for v7x ----
    if batch_block is None:
        nb = 1
        for cand in range(1, min(N, 32) + 1):
            if N % cand == 0 and (N // cand >= 2 or N == 1):
                nb = cand
    else:
        nb = batch_block
    assert N % nb == 0, "batch_block must divide the batch size"

    # Cast weights to bf16 once (tiny; hoisted out of the kernel).
    we = params["w_edge"].astype(jnp.bfloat16)   # (C, Ce)
    w3 = params["w_k3"].astype(jnp.bfloat16)     # (C, C)
    w4 = params["w_k4"].astype(jnp.bfloat16)     # (C, C)

    # Rough double-buffered VMEM footprint; only raise the scoped limit when
    # approaching the smallest default (v5e: 16 MiB).  At the auto nb<=32 this
    # stays at a few MiB on every generation (v5e/v6e/v7x).
    per_step = nb * HWp * (C * x_flat.dtype.itemsize
                           + Ce * xe_flat.dtype.itemsize
                           + C * jnp.dtype(out_dtype).itemsize)
    cp_kwargs = dict(dimension_semantics=("parallel",))
    est = 2 * per_step + 64 * 1024
    if est > 12 * 1024 * 1024:
        cp_kwargs["vmem_limit_bytes"] = min(est + (4 << 20), 64 * 1024 * 1024)

    out = pl.pallas_call(
        _elpa_kernel,
        out_shape=jax.ShapeDtypeStruct((N, C, HWp), out_dtype),
        grid_spec=pltpu.PrefetchScalarGridSpec(
            num_scalar_prefetch=0,
            grid=(N // nb,),
            in_specs=[
                pl.BlockSpec((nb, C, HWp), lambda n: (n, 0, 0)),    # x
                pl.BlockSpec((nb, Ce, HWp), lambda n: (n, 0, 0)),   # x_edge
                pl.BlockSpec((C, Ce), lambda n: (0, 0)),            # kedge 1x1
                pl.BlockSpec((C, C), lambda n: (0, 0)),             # k3    1x1
                pl.BlockSpec((C, C), lambda n: (0, 0)),             # k4    1x1
            ],
            out_specs=pl.BlockSpec((nb, C, HWp), lambda n: (n, 0, 0)),
        ),
        compiler_params=pltpu.CompilerParams(**cp_kwargs),
    )(x_flat, xe_flat, we, w3, w4)

    if HWp != HW:
        out = out[..., :HW]
    return out.reshape(N, C, H, W)


# ------------------------- pure-JAX reference (f32) -------------------------

def _conv1x1(inp_nchw, w_oi):
    return jnp.einsum("oc,nchw->nohw", w_oi, inp_nchw)


def elpa_attention_branch_reference(x, x_edge, params):
    y = jax.nn.sigmoid(_conv1x1(x_edge, params["w_edge"]))
    out = _conv1x1(x, params["w_k3"]) * y
    return _conv1x1(out, params["w_k4"])


def make_params(key, nf, edge_ch=4):
    k0, k1, k2 = jax.random.split(key, 3)

    def init(k, shape, fan_in):
        return jax.random.normal(k, shape, jnp.float32) / np.sqrt(fan_in)

    return {
        "w_edge": init(k0, (nf, edge_ch), edge_ch),   # Conv2d(4, nf, 1), (out, in)
        "w_k3":   init(k1, (nf, nf), nf),             # Conv2d(nf, nf, 1)
        "w_k4":   init(k2, (nf, nf), nf),             # Conv2d(nf, nf, 1)
    }


if __name__ == "__main__":
    N, C, H, W = 2, 32, 16, 16      # nf=32, x_edge has 4 channels (module spec)
    key = jax.random.PRNGKey(0)
    kx, ke, kp = jax.random.split(key, 3)

    x_f32 = jax.random.normal(kx, (N, C, H, W), jnp.float32)
    xe_f32 = jax.random.normal(ke, (N, 4, H, W), jnp.float32)
    params = make_params(kp, C)

    # End-to-end bf16 activations: halves HBM traffic for the memory-bound kernel.
    x = x_f32.astype(jnp.bfloat16)
    x_edge = xe_f32.astype(jnp.bfloat16)

    out = jax.block_until_ready(elpa_attention_branch_pallas(x, x_edge, params))

    # Reference in f32 on the same (bf16-rounded) inputs, f32 weights.
    ref = elpa_attention_branch_reference(x.astype(jnp.float32),
                                          x_edge.astype(jnp.float32), params)
    ref = jax.block_until_ready(ref)

    # bf16 MXU operands / bf16 output with f32 accumulation -> loosened tolerance.
    np.testing.assert_allclose(np.asarray(out.astype(jnp.float32)),
                               np.asarray(ref), rtol=3e-2, atol=3e-2)
    print("KERNEL_OK")
</pallas_src>

<mosaic_0001>
module attributes {stable_mosaic.version = 11 : i64} {
  func.func @_elpa_kernel(%arg0: i32, %arg1: memref<1x32x256xbf16, #tpu.memory_space<vmem>>, %arg2: memref<1x4x256xbf16, #tpu.memory_space<vmem>>, %arg3: memref<32x4xbf16, #tpu.memory_space<vmem>>, %arg4: memref<32x32xbf16, #tpu.memory_space<vmem>>, %arg5: memref<32x32xbf16, #tpu.memory_space<vmem>>, %arg6: memref<1x32x256xbf16, #tpu.memory_space<vmem>>) attributes {dimension_semantics = [#tpu.dimension_semantics<parallel>], iteration_bounds = array<i64: 2>, scalar_prefetch = 0 : i64, scratch_operands = 0 : i64, tpu.core_type = #tpu.core_type<tc>, window_params = [{transform_indices = @transform_0, window_bounds = array<i64: 1, 32, 256>}, {transform_indices = @transform_1, window_bounds = array<i64: 1, 4, 256>}, {pipeline_mode = #tpu.pipeline_mode<synchronous>, transform_indices = @transform_2, window_bounds = array<i64: 32, 4>}, {pipeline_mode = #tpu.pipeline_mode<synchronous>, transform_indices = @transform_3, window_bounds = array<i64: 32, 32>}, {pipeline_mode = #tpu.pipeline_mode<synchronous>, transform_indices = @transform_4, window_bounds = array<i64: 32, 32>}, {transform_indices = @transform_5, window_bounds = array<i64: 1, 32, 256>}]} {
    %c0 = arith.constant 0 : index
    %c0_0 = arith.constant 0 : index
    %0 = vector.load %arg3[%c0, %c0_0] : memref<32x4xbf16, #tpu.memory_space<vmem>>, vector<32x4xbf16>
    %c0_1 = arith.constant 0 : index
    %c0_2 = arith.constant 0 : index
    %1 = vector.load %arg4[%c0_1, %c0_2] : memref<32x32xbf16, #tpu.memory_space<vmem>>, vector<32x32xbf16>
    %c0_3 = arith.constant 0 : index
    %c0_4 = arith.constant 0 : index
    %2 = vector.load %arg5[%c0_3, %c0_4] : memref<32x32xbf16, #tpu.memory_space<vmem>>, vector<32x32xbf16>
    %c0_i32 = arith.constant 0 : i32
    %3 = arith.index_cast %c0_i32 : i32 to index
    %c0_5 = arith.constant 0 : index
    %c0_6 = arith.constant 0 : index
    %4 = vector.load %arg1[%3, %c0_5, %c0_6] : memref<1x32x256xbf16, #tpu.memory_space<vmem>>, vector<1x32x256xbf16>
    %5 = vector.shape_cast %4 : vector<1x32x256xbf16> to vector<32x256xbf16>
    %6 = arith.index_cast %c0_i32 : i32 to index
    %c0_7 = arith.constant 0 : index
    %c0_8 = arith.constant 0 : index
    %7 = vector.load %arg2[%6, %c0_7, %c0_8] : memref<1x4x256xbf16, #tpu.memory_space<vmem>>, vector<1x4x256xbf16>
    %8 = vector.shape_cast %7 : vector<1x4x256xbf16> to vector<4x256xbf16>
    %cst = arith.constant dense<0.000000e+00> : vector<32x256xf32>
    %9 = tpu.matmul %0, %8, %cst {dimension_numbers = #tpu.dot_dimension_numbers<[1], [0], [0], [1], [0, 0, 1, 1], [], []>} : vector<32x4xbf16>, vector<4x256xbf16>, vector<32x256xf32> -> vector<32x256xf32>
    %cst_9 = arith.constant 0.000000e+00 : f32
    %10 = vector.broadcast %cst_9 : f32 to vector<32x256xf32>
    %11 = arith.subf %10, %9 : vector<32x256xf32>
    %12 = math.exp %11 : vector<32x256xf32>
    %cst_10 = arith.constant 1.000000e+00 : f32
    %13 = vector.broadcast %cst_10 : f32 to vector<32x256xf32>
    %14 = arith.addf %13, %12 : vector<32x256xf32>
    %cst_11 = arith.constant 1.000000e+00 : f32
    %15 = vector.broadcast %cst_11 : f32 to vector<32x256xf32>
    %16 = arith.divf %15, %14 : vector<32x256xf32>
    %cst_12 = arith.constant dense<0.000000e+00> : vector<32x256xf32>
    %17 = tpu.matmul %1, %5, %cst_12 {dimension_numbers = #tpu.dot_dimension_numbers<[1], [0], [0], [1], [0, 0, 1, 1], [], []>} : vector<32x32xbf16>, vector<32x256xbf16>, vector<32x256xf32> -> vector<32x256xf32>
    %18 = arith.mulf %17, %16 : vector<32x256xf32>
    %19 = arith.truncf %18 : vector<32x256xf32> to vector<32x256xbf16>
    %cst_13 = arith.constant dense<0.000000e+00> : vector<32x256xf32>
    %20 = tpu.matmul %2, %19, %cst_13 {dimension_numbers = #tpu.dot_dimension_numbers<[1], [0], [0], [1], [0, 0, 1, 1], [], []>} : vector<32x32xbf16>, vector<32x256xbf16>, vector<32x256xf32> -> vector<32x256xf32>
    %21 = arith.truncf %20 : vector<32x256xf32> to vector<32x256xbf16>
    %22 = arith.index_cast %c0_i32 : i32 to index
    %c0_14 = arith.constant 0 : index
    %c0_15 = arith.constant 0 : index
    %23 = vector.load %arg6[%22, %c0_14, %c0_15] : memref<1x32x256xbf16, #tpu.memory_space<vmem>>, vector<1x32x256xbf16>
    %24 = vector.shape_cast %23 : vector<1x32x256xbf16> to vector<32x256xbf16>
    %25 = vector.shape_cast %21 : vector<32x256xbf16> to vector<1x32x256xbf16>
    tpu.vector_store %arg6[%22, %c0_14, %c0_15], %25 {strides = array<i32>} : memref<1x32x256xbf16, #tpu.memory_space<vmem>>, vector<1x32x256xbf16>,
    %c1_i32 = arith.constant 1 : i32
    return
  }
  func.func @transform_0(%arg0: i32) -> (i32, i32, i32) {
    %c0_i32 = arith.constant 0 : i32
    %c0_i32_0 = arith.constant 0 : i32
    %c0_i32_1 = arith.constant 0 : i32
    return %arg0, %c0_i32, %c0_i32_0 : i32, i32, i32
  }
  func.func @transform_1(%arg0: i32) -> (i32, i32, i32) {
    %c0_i32 = arith.constant 0 : i32
    %c0_i32_0 = arith.constant 0 : i32
    %c0_i32_1 = arith.constant 0 : i32
    return %arg0, %c0_i32, %c0_i32_0 : i32, i32, i32
  }
  func.func @transform_2(%arg0: i32) -> (i32, i32) {
    %c0_i32 = arith.constant 0 : i32
    %c0_i32_0 = arith.constant 0 : i32
    %c0_i32_1 = arith.constant 0 : i32
    return %c0_i32, %c0_i32_0 : i32, i32
  }
  func.func @transform_3(%arg0: i32) -> (i32, i32) {
    %c0_i32 = arith.constant 0 : i32
    %c0_i32_0 = arith.constant 0 : i32
    %c0_i32_1 = arith.constant 0 : i32
    return %c0_i32, %c0_i32_0 : i32, i32
  }
  func.func @transform_4(%arg0: i32) -> (i32, i32) {
    %c0_i32 = arith.constant 0 : i32
    %c0_i32_0 = arith.constant 0 : i32
    %c0_i32_1 = arith.constant 0 : i32
    return %c0_i32, %c0_i32_0 : i32, i32
  }
  func.func @transform_5(%arg0: i32) -> (i32, i32, i32) {
    %c0_i32 = arith.constant 0 : i32
    %c0_i32_0 = arith.constant 0 : i32
    %c0_i32_1 = arith.constant 0 : i32
    return %arg0, %c0_i32, %c0_i32_0 : i32, i32, i32
  }
}

</mosaic_0001>

<llo_original>
// kernel: tpu_custom_call.1
$region0: #{tpu_custom_call.1}
  #allocation0 [shape = 'u32[]', space=smem, size = 0x4, offset = 0x4, fixed_abs, tag = 'smem constant byte address 0x4 - core index']
  #allocation1 [shape = 'u32[72,128]{1,0:T(1,128)}', space=vmem, size = 0x9000, scoped, tag = 'internal scratch']
  %s0 = inlined_call_operand.hbm [shape: bf16[2,32,256], index: 0, kind: input, shape index: {}]
  %s1 = inlined_call_operand.hbm [shape: bf16[2,4,256], index: 1, kind: input, shape index: {}]
  %s2 = inlined_call_operand.vmem [shape: bf16[32,4], index: 2, kind: input, shape index: {}]
  %s3 = inlined_call_operand.vmem [shape: bf16[32,32], index: 3, kind: input, shape index: {}]
  %s4 = inlined_call_operand.hbm [shape: bf16[32,32], index: 4, kind: input, shape index: {}]
  %s5 = inlined_call_operand.hbm [shape: bf16[2,32,256], index: 5, kind: output, shape index: {}]
  %s6 = sld [smem:[#allocation0]]
  $region65: #{tpu_custom_call.1} parent=0
    _
  %s8 = ssub.s32 1, %s6
  %s9 = scalar_select 0, %s8, %s6
  $region1: #{tpu_custom_call.1} parent=0
    #allocation2 [shape = 'u8[32768]{0}', space=vmem, size = 0x8000, scoped, tag = 'input window, operand 0']
    #allocation3 [shape = 's32[2]{0}', space=sflag, size = 0x8, scoped, tag = 'scoped memory for tpu_custom_call.1']
    #allocation4 [shape = 's32[2]{0}', space=sflag, size = 0x8, scoped, tag = 'scoped memory for tpu_custom_call.1']
    #allocation5 [shape = 'u8[4096]{0}', space=vmem, size = 0x1000, scoped, tag = 'input window, operand 1']
    #allocation6 [shape = 's32[2]{0}', space=sflag, size = 0x8, scoped, tag = 'scoped memory for tpu_custom_call.1']
    #allocation7 [shape = 'u8[8192]{0}', space=vmem, size = 0x2000, scoped, tag = 'input window, operand 4, single buffered']
    #allocation8 [shape = 'u8[32768]{0}', space=vmem, size = 0x8000, scoped, tag = 'output window, operand 0']
    %10 = vsyncpa [#allocation3], 0
    %s11 = scalar_lea.sflag [#allocation3], 1
    %12 = vsyncpa %s11, 0
    %13 = vsyncpa [#allocation6], 0
    %s14 = scalar_lea.sflag [#allocation6], 1
    %15 = vsyncpa %s14, 0
    %16 = vsyncpa [#allocation4], 0
    %s17 = scalar_lea.sflag [#allocation4], 1
    %18 = vsyncpa %s17, 0
    loop: start=0, step=1, limit=4
    $region2: #{tpu_custom_call.1} parent=1 // loop_pre_header
      _
    $region3: #{tpu_custom_call.1} parent=1 // loop_header
      %s20 = sphi 0, %s24
      %p21 = scmp.ge.s32.totalorder %s20, 4
      %s30 = sphi 0, %s32
      %s33 = sphi 0, %s30
      %s34 = sphi 0, %s33
      %s50 = sphi 0, %s34
      %s56 = sphi 0, %s58
      %s59 = sphi 0, %s56
      %s60 = sphi 0, %s59
      %s76 = sphi 0, %s60
      %s80 = sphi 0, %s80
      %s82 = sphi 0, %s80
      %s83 = sphi 0, %s82
      %s97 = sphi 0, %s83
      %s101 = sphi 0, %s101
      %s103 = sphi 0, %s101
      %s104 = sphi 0, %s103
      %s118 = sphi 0, %s104
      %s122 = sphi 0, %s122
      %s124 = sphi 0, %s122
      %s125 = sphi 0, %s124
      %s139 = sphi 0, %s125
      %s145 = sphi 0, %s147
      %s148 = sphi 0, %s145
      %s149 = sphi 0, %s148
      %s165 = sphi 0, %s149
    $region4: #{tpu_custom_call.1} parent=1 // loop_header_branch
      %23 = sbr.rel (%p21) target = $region8
    $region5: #{tpu_custom_call.1} parent=1 // loop_body
      %s25 = ssub.s32 %s20, 1
      %s26 = ssub.s32 %s20, 2
      %s27 = sadd.s32 %s20, 1
      %s28 = ssub.s32 %s20, %s27
      %p29 = scmp.eq.s32.totalorder %s28, 0
      %s31 = sadd.s32 %s30, 1
      %s32 = scalar_select %p29, %s30, %s31
      %p35 = pneg %p29
      %p36 = scmp.eq.s32.totalorder %s20, 1
      %p37 = por %p35, %p36
      %p38 = scmp.ne.s32.totalorder %s30, %s33
      %p39 = scmp.eq.s32.totalorder %s20, 0
      %p40 = por %p38, %p39
      %p41 = scmp.ne.s32.totalorder %s30, %s33
      %p42 = scmp.eq.s32.totalorder %s25, 1
      %p43 = por %p41, %p42
      %p44 = scmp.ne.s32.totalorder %s33, %s34
      %p45 = scmp.eq.s32.totalorder %s25, 0
      %p46 = por %p44, %p45
      %p47 = scmp.ne.s32.totalorder %s33, %s34
      %p48 = scmp.eq.s32.totalorder %s26, 1
      %p49 = por %p47, %p48
      %p51 = scmp.ne.s32.totalorder %s34, %s50
      %p52 = scmp.eq.s32.totalorder %s26, 0
      %p53 = por %p51, %p52
      %s54 = ssub.s32 %s20, %s27
      %p55 = scmp.eq.s32.totalorder %s54, 0
      %s57 = sadd.s32 %s56, 1
      %s58 = scalar_select %p55, %s56, %s57
      %p61 = pneg %p55
      %p62 = scmp.eq.s32.totalorder %s20, 1
      %p63 = por %p61, %p62
      %p64 = scmp.ne.s32.totalorder %s56, %s59
      %p65 = scmp.eq.s32.totalorder %s20, 0
      %p66 = por %p64, %p65
      %p67 = scmp.ne.s32.totalorder %s56, %s59
      %p68 = scmp.eq.s32.totalorder %s25, 1
      %p69 = por %p67, %p68
      %p70 = scmp.ne.s32.totalorder %s59, %s60
      %p71 = scmp.eq.s32.totalorder %s25, 0
      %p72 = por %p70, %p71
      %p73 = scmp.ne.s32.totalorder %s59, %s60
      %p74 = scmp.eq.s32.totalorder %s26, 1
      %p75 = por %p73, %p74
      %p77 = scmp.ne.s32.totalorder %s60, %s76
      %p78 = scmp.eq.s32.totalorder %s26, 0
      %p79 = por %p77, %p78
      %s81 = sadd.s32 %s80, 1
      %p84 = scmp.eq.s32.totalorder %s20, 1
      %p85 = scmp.ne.s32.totalorder %s80, %s82
      %p86 = scmp.eq.s32.totalorder %s20, 0
      %p87 = por %p85, %p86
      %p88 = scmp.ne.s32.totalorder %s80, %s82
      %p89 = scmp.eq.s32.totalorder %s25, 1
      %p90 = por %p88, %p89
      %p91 = scmp.ne.s32.totalorder %s82, %s83
      %p92 = scmp.eq.s32.totalorder %s25, 0
      %p93 = por %p91, %p92
      %p94 = scmp.ne.s32.totalorder %s82, %s83
      %p95 = scmp.eq.s32.totalorder %s26, 1
      %p96 = por %p94, %p95
      %p98 = scmp.ne.s32.totalorder %s83, %s97
      %p99 = scmp.eq.s32.totalorder %s26, 0
      %p100 = por %p98, %p99
      %s102 = sadd.s32 %s101, 1
      %p105 = scmp.eq.s32.totalorder %s20, 1
      %p106 = scmp.ne.s32.totalorder %s101, %s103
      %p107 = scmp.eq.s32.totalorder %s20, 0
      %p108 = por %p106, %p107
      %p109 = scmp.ne.s32.totalorder %s101, %s103
      %p110 = scmp.eq.s32.totalorder %s25, 1
      %p111 = por %p109, %p110
      %p112 = scmp.ne.s32.totalorder %s103, %s104
      %p113 = scmp.eq.s32.totalorder %s25, 0
      %p114 = por %p112, %p113
      %p115 = scmp.ne.s32.totalorder %s103, %s104
      %p116 = scmp.eq.s32.totalorder %s26, 1
      %p117 = por %p115, %p116
      %p119 = scmp.ne.s32.totalorder %s104, %s118
      %p120 = scmp.eq.s32.totalorder %s26, 0
      %p121 = por %p119, %p120
      %s123 = sadd.s32 %s122, 1
      %p126 = scmp.eq.s32.totalorder %s20, 1
      %p127 = scmp.ne.s32.totalorder %s122, %s124
      %p128 = scmp.eq.s32.totalorder %s20, 0
      %p129 = por %p127, %p128
      %p130 = scmp.ne.s32.totalorder %s122, %s124
      %p131 = scmp.eq.s32.totalorder %s25, 1
      %p132 = por %p130, %p131
      %p133 = scmp.ne.s32.totalorder %s124, %s125
      %p134 = scmp.eq.s32.totalorder %s25, 0
      %p135 = por %p133, %p134
      %p136 = scmp.ne.s32.totalorder %s124, %s125
      %p137 = scmp.eq.s32.totalorder %s26, 1
      %p138 = por %p136, %p137
      %p140 = scmp.ne.s32.totalorder %s125, %s139
      %p141 = scmp.eq.s32.totalorder %s26, 0
      %p142 = por %p140, %p141
      %s143 = ssub.s32 %s20, %s27
      %p144 = scmp.eq.s32.totalorder %s143, 0
      %s146 = sadd.s32 %s145, 1
      %s147 = scalar_select %p144, %s145, %s146
      %p150 = pneg %p144
      %p151 = scmp.eq.s32.totalorder %s20, 1
      %p152 = por %p150, %p151
      %p153 = scmp.ne.s32.totalorder %s145, %s148
      %p154 = scmp.eq.s32.totalorder %s20, 0
      %p155 = por %p153, %p154
      %p156 = scmp.ne.s32.totalorder %s145, %s148
      %p157 = scmp.eq.s32.totalorder %s25, 1
      %p158 = por %p156, %p157
      %p159 = scmp.ne.s32.totalorder %s148, %s149
      %p160 = scmp.eq.s32.totalorder %s25, 0
      %p161 = por %p159, %p160
      %p162 = scmp.ne.s32.totalorder %s148, %s149
      %p163 = scmp.eq.s32.totalorder %s26, 1
      %p164 = por %p162, %p163
      %p166 = scmp.ne.s32.totalorder %s149, %s165
      %p167 = scmp.eq.s32.totalorder %s26, 0
      %p168 = por %p166, %p167
      %p169 = scmp.le.s32.totalorder 1, %s20
      %p170 = scmp.lt.s32.totalorder %s20, 3
      %p171 = pnand %p169, %p170
      %p172 = pneg %p171
      // Predicated region
      $region9: #{tpu_custom_call.1} parent=5 // pred_check
        _
      $region10: #{tpu_custom_call.1} parent=5 // pred_check_branch
        %174 = sbr.rel (%p171) target = $region12
      $region11: #{tpu_custom_call.1} parent=5 // pred_region
        %s175 = ssub.s32 %s20, 1
        // Predicated region
        $region13: #{tpu_custom_call.1} parent=11 // pred_check
          %p176 = pneg %p93
        $region14: #{tpu_custom_call.1} parent=11 // pred_check_branch
          %178 = sbr.rel (%p176) target = $region16
        $region15: #{tpu_custom_call.1} parent=11 // pred_region
          _
        $region16: #{tpu_custom_call.1} parent=11 // pred_fallthru
          _
        // Predicated region
        $region17: #{tpu_custom_call.1} parent=11 // pred_check
          %p179 = pneg %p114
        $region18: #{tpu_custom_call.1} parent=11 // pred_check_branch
          %181 = sbr.rel (%p179) target = $region20
        $region19: #{tpu_custom_call.1} parent=11 // pred_region
          _
        $region20: #{tpu_custom_call.1} parent=11 // pred_fallthru
          _
        // Predicated region
        $region21: #{tpu_custom_call.1} parent=11 // pred_check
          %p182 = pneg %p135
        $region22: #{tpu_custom_call.1} parent=11 // pred_check_branch
          %184 = sbr.rel (%p182) target = $region24
        $region23: #{tpu_custom_call.1} parent=11 // pred_region
          %186 = vsyncadd [#allocation6], 0
          %s187 = sshll.u32 %s4, 4
          %s188 = int_to_ptr.hbm [resolvable:$true] %s187
          %s189 = sshll.u32 [#allocation7], 4
          %s190 = int_to_ptr.vmem [resolvable:$true] %s189
          %195 = dma.hbm_to_vmem [thread:$0]  %s188, 256, %s190, [#allocation6], 64, 64, 4
        $region24: #{tpu_custom_call.1} parent=11 // pred_fallthru
          _
      $region12: #{tpu_custom_call.1} parent=5 // pred_fallthru
        _
      %p196 = scmp.lt.s32.totalorder %s20, 2
      // Predicated region
      $region25: #{tpu_custom_call.1} parent=5 // pred_check
        %p197 = pneg %p196
      $region26: #{tpu_custom_call.1} parent=5 // pred_check_branch
        %199 = sbr.rel (%p197) target = $region28
      $region27: #{tpu_custom_call.1} parent=5 // pred_region
        // Predicated region
        $region29: #{tpu_custom_call.1} parent=27 // pred_check
          %p200 = pneg %p40
        $region30: #{tpu_custom_call.1} parent=27 // pred_check_branch
          %202 = sbr.rel (%p200) target = $region32
        $region31: #{tpu_custom_call.1} parent=27 // pred_region
          %s203 = sand.u32 %s30, 1
          %s204 = scalar_lea.sflag [#allocation3], %s203
          %s205 = sand.u32 %s30, 1
          %s206 = smul.addr %s205, 32
          %s207 = scalar_lea.vmem [#allocation2], %s206
          %209 = vsyncadd %s204, 0
          %s210 = smul.addr %s20, 8
          %s211 = smul.addr %s210, 4
          %s212 = scalar_lea.hbm %s0, %s211
          %s213 = sshll.u32 %s212, 4
          %s214 = int_to_ptr.hbm [resolvable:$true] %s213
          %s215 = sshll.u32 %s207, 4
          %s216 = int_to_ptr.vmem [resolvable:$true] %s215
          %221 = dma.hbm_to_vmem [thread:$0]  %s214, 512, %s216, %s204, 128, 128, 8
        $region32: #{tpu_custom_call.1} parent=27 // pred_fallthru
          _
        // Predicated region
        $region33: #{tpu_custom_call.1} parent=27 // pred_check
          %p222 = pneg %p66
        $region34: #{tpu_custom_call.1} parent=27 // pred_check_branch
          %224 = sbr.rel (%p222) target = $region36
        $region35: #{tpu_custom_call.1} parent=27 // pred_region
          %s225 = sand.u32 %s20, 1
          %s226 = scalar_lea.sflag [#allocation6], %s225
          %s227 = sand.u32 %s56, 1
          %s228 = smul.addr %s227, 4
          %s229 = scalar_lea.vmem [#allocation5], %s228
          %231 = vsyncadd %s226, 0
          %s232 = smul.addr %s20, 2
          %s233 = smul.addr %s232, 2
          %s234 = scalar_lea.hbm %s1, %s233
          %s236 = sshll.u32 %s234, 4
          %s237 = int_to_ptr.hbm [resolvable:$true] %s236
          %s238 = sshll.u32 %s229, 4
          %s239 = int_to_ptr.vmem [resolvable:$true] %s238
          %241 = dma.hbm_to_vmem [thread:$0]  %s237, 64, %s239, %s226
        $region36: #{tpu_custom_call.1} parent=27 // pred_fallthru
          _
      $region28: #{tpu_custom_call.1} parent=5 // pred_fallthru
        _
      %p242 = scmp.le.s32.totalorder 1, %s20
      %p243 = scmp.lt.s32.totalorder %s20, 3
      %p244 = pnand %p242, %p243
      %p245 = pneg %p244
      // Predicated region
      $region37: #{tpu_custom_call.1} parent=5 // pred_check
        _
      $region38: #{tpu_custom_call.1} parent=5 // pred_check_branch
        %247 = sbr.rel (%p244) target = $region40
      $region39: #{tpu_custom_call.1} parent=5 // pred_region
        %s248 = ssub.s32 %s20, 1
        %s249 = sand.u32 %s33, 1
        %s250 = scalar_lea.sflag [#allocation3], %s249
        %s251 = sand.u32 %s33, 1
        %s252 = smul.addr %s251, 32
        %s253 = scalar_lea.vmem [#allocation2], %s252
        // Predicated region
        $region41: #{tpu_custom_call.1} parent=39 // pred_check
          %p254 = pneg %p46
        $region42: #{tpu_custom_call.1} parent=39 // pred_check_branch
          %256 = sbr.rel (%p254) target = $region44
        $region43: #{tpu_custom_call.1} parent=39 // pred_region
          %258 = dma.done %s250, 512
        $region44: #{tpu_custom_call.1} parent=39 // pred_fallthru
          _
        %s259 = sand.u32 %s25, 1
        %s260 = scalar_lea.sflag [#allocation6], %s259
        %s261 = sand.u32 %s59, 1
        %s262 = smul.addr %s261, 4
        %s263 = scalar_lea.vmem [#allocation5], %s262
        // Predicated region
        $region45: #{tpu_custom_call.1} parent=39 // pred_check
          %p264 = pneg %p72
        $region46: #{tpu_custom_call.1} parent=39 // pred_check_branch
          %266 = sbr.rel (%p264) target = $region48
        $region47: #{tpu_custom_call.1} parent=39 // pred_region
          %268 = dma.done %s260, 64
        $region48: #{tpu_custom_call.1} parent=39 // pred_fallthru
          _
        // Predicated region
        $region49: #{tpu_custom_call.1} parent=39 // pred_check
          %p269 = pneg %p135
        $region50: #{tpu_custom_call.1} parent=39 // pred_check_branch
          %271 = sbr.rel (%p269) target = $region52
        $region51: #{tpu_custom_call.1} parent=39 // pred_region
          %273 = dma.done [#allocation6], 256
        $region52: #{tpu_custom_call.1} parent=39 // pred_fallthru
          _
        %s274 = sand.u32 %s33, 1
        %s275 = scalar_lea.sflag [#allocation3], %s274
        %s276 = sand.u32 %s33, 1
        %s277 = smul.addr %s276, 32
        %s278 = scalar_lea.vmem [#allocation2], %s277
        %p279 = pneg %p46
        %p280 = pneg %p43
        %s281 = sand.u32 %s25, 1
        %s282 = scalar_lea.sflag [#allocation6], %s281
        %s283 = sand.u32 %s59, 1
        %s284 = smul.addr %s283, 4
        %s285 = scalar_lea.vmem [#allocation5], %s284
        %p286 = pneg %p72
        %p287 = pneg %p69
        %p288 = pneg %p93
        %p289 = pneg %p90
        %p290 = pneg %p114
        %p291 = pneg %p111
        %p292 = pneg %p135
        %p293 = pneg %p132
        %p294 = pneg %p161
        %p295 = pneg %p158
        %s296 = sand.u32 %s148, 1
        %s297 = scalar_lea.sflag [#allocation4], %s296
        %s298 = sand.u32 %s148, 1
        %s299 = smul.addr %s298, 32
        %s300 = scalar_lea.vmem [#allocation8], %s299
        %v302 = vld [vmem:[%s2] sm:$0xf]
        %v303 = vld [vmem:[%s2 + $0x4] sm:$0xf]
        %v304 = vld [vmem:[%s2 + $0x8] sm:$0xf]
        %v305 = vld [vmem:[%s2 + $0xc] sm:$0xf]
        %v306 = vld [vmem:[%s3] sm:$0xf]
        %v307 = vld [vmem:[%s3 + $0x4] sm:$0xf]
        %v308 = vld [vmem:[%s3 + $0x8] sm:$0xf]
        %v309 = vld [vmem:[%s3 + $0xc] sm:$0xf]
        %v310 = vld [vmem:[#allocation7] sm:$0xf]
        %v311 = vld [vmem:[#allocation7 + $0x4] sm:$0xf]
        %v312 = vld [vmem:[#allocation7 + $0x8] sm:$0xf]
        %v313 = vld [vmem:[#allocation7 + $0xc] sm:$0xf]
        %v314 = vld [vmem:[%s253] sm:$0xff]
        %v315 = vld [vmem:[%s253 + $0x8] sm:$0xff]
        %v316 = vld [vmem:[%s253 + $0x10] sm:$0xff]
        %v317 = vld [vmem:[%s253 + $0x18] sm:$0xff]
        %v318 = vld [vmem:[%s263] sm:$0xf]
        %v323 = vunpack.c.l.b16 %v302
        %v324 = vunpack.c.l.b16 %v303
        %v325 = vunpack.c.l.b16 %v304
        %v326 = vunpack.c.l.b16 %v305
        %v327 = vpack.c.b16 %v324, %v323
        %v328 = vpack.c.b16 %v326, %v325
        %330 = vst [vmem:[#allocation1] ss:$4 sm:$0xff] %v318
        %v331 = vld.sshfl [vmem:[#allocation1] sm:$0xff pattern:$0x73625140]
        %v332 = vld.sshfl [vmem:[#allocation1 + $0x8] sm:$0xff pattern:$0x73625140]
        %vm333 = vcmask 31744
        %v335 = vsel %vm333, %v327, 0
        %v338 = vsel %vm333, %v328, 0
        %vm340 = vcmask 1041408
        %v341 = vsel %vm340, %v331, 0
        %v343 = vsel %vm340, %v332, 0
        %345 = vmatpush.bf16.msra.mxu0 0
        %346 = vmatpush.bf16.msra.mxu0 0
        %347 = vmatpush.bf16.msra.mxu0 0
        %348 = vmatpush.bf16.msra.mxu0 0
        %349 = vmatpush.bf16.msra.mxu0 0
        %350 = vmatpush.bf16.msra.mxu0 0
        %351 = vmatpush.bf16.msra.mxu0 0
        %352 = vmatpush.bf16.msra.mxu0 %v341
        %353 = vmatmul.bf16.gmra.mxu0 %v335
        %v354 = vpop.f32.mrf.mxu0
        %v355 = vadd.f32 0.0, %v354
        %v356 = vpop.f32.mrf.mxu0
        %v357 = vadd.f32 0.0, %v356
        %358 = vmatmul.bf16.gmra.mxu0 %v338
        %v359 = vpop.f32.mrf.mxu0
        %v360 = vadd.f32 0.0, %v359
        %v361 = vpop.f32.mrf.mxu0
        %v362 = vadd.f32 0.0, %v361
        %363 = vdwg.mxu0
        %364 = vmatpush.bf16.msra.mxu0 0
        %365 = vmatpush.bf16.msra.mxu0 0
        %366 = vmatpush.bf16.msra.mxu0 0
        %367 = vmatpush.bf16.msra.mxu0 0
        %368 = vmatpush.bf16.msra.mxu0 0
        %369 = vmatpush.bf16.msra.mxu0 0
        %370 = vmatpush.bf16.msra.mxu0 0
        %371 = vmatpush.bf16.msra.mxu0 %v343
        %372 = vmatmul.bf16.gmra.mxu0 %v335
        %v373 = vpop.f32.mrf.mxu0
        %v374 = vadd.f32 0.0, %v373
        %v375 = vpop.f32.mrf.mxu0
        %v376 = vadd.f32 0.0, %v375
        %377 = vmatmul.bf16.gmra.mxu0 %v338
        %v378 = vpop.f32.mrf.mxu0
        %v379 = vadd.f32 0.0, %v378
        %v380 = vpop.f32.mrf.mxu0
        %v381 = vadd.f32 0.0, %v380
        %382 = vdwg.mxu0
        %v383 = vsub.f32 0.0, %v355
        %v384 = vsub.f32 0.0, %v374
        %v385 = vsub.f32 0.0, %v357
        %v386 = vsub.f32 0.0, %v376
        %v387 = vsub.f32 0.0, %v360
        %v388 = vsub.f32 0.0, %v379
        %v389 = vsub.f32 0.0, %v362
        %v390 = vsub.f32 0.0, %v381
        %v391 = vmul.f32 %v383, 1.442695
        %v392 = vpow.pop %v391
        %v393 = vmul.f32 %v384, 1.442695
        %v394 = vpow.pop %v393
        %v395 = vmul.f32 %v385, 1.442695
        %v396 = vpow.pop %v395
        %v397 = vmul.f32 %v386, 1.442695
        %v398 = vpow.pop %v397
        %v399 = vmul.f32 %v387, 1.442695
        %v400 = vpow.pop %v399
        %v401 = vmul.f32 %v388, 1.442695
        %v402 = vpow.pop %v401
        %v403 = vmul.f32 %v389, 1.442695
        %v404 = vpow.pop %v403
        %v405 = vmul.f32 %v390, 1.442695
        %v406 = vpow.pop %v405
        %v407 = vadd.f32 %v392, 1.0
        %v408 = vadd.f32 %v394, 1.0
        %v409 = vadd.f32 %v396, 1.0
        %v410 = vadd.f32 %v398, 1.0
        %v411 = vadd.f32 %v400, 1.0
        %v412 = vadd.f32 %v402, 1.0
        %v413 = vadd.f32 %v404, 1.0
        %v414 = vadd.f32 %v406, 1.0
        %v415 = vrcp.pop %v407
        %v416 = vmul.f32 %v407, %v415
        %v417 = vsub.f32 1.0, %v416
        %v418 = vmul.f32 %v415, %v417
        %v419 = vadd.f32 %v415, %v418
        %vm420 = vweird.f32 %v407
        %vm421 = vweird.f32 %v415
        %vm422 = vmor %vm420, %vm421
        %v423 = vsel %vm422, %v415, %v419
        %v424 = vand.u32 2147483647, %v407
        %vm425 = vcmp.eq.f32.partialorder %v424, 8.507059e+37
        %v426 = vand.u32 %v407, 2147483648
        %v427 = vor.u32 1.1754944e-38, %v426
        %v428 = vsel %vm425, %v427, %v423
        %v429 = vmul.f32 1.0, %v428
        %v430 = vrcp.pop %v408
        %v431 = vmul.f32 %v408, %v430
        %v432 = vsub.f32 1.0, %v431
        %v433 = vmul.f32 %v430, %v432
        %v434 = vadd.f32 %v430, %v433
        %vm435 = vweird.f32 %v408
        %vm436 = vweird.f32 %v430
        %vm437 = vmor %vm435, %vm436
        %v438 = vsel %vm437, %v430, %v434
        %v439 = vand.u32 2147483647, %v408
        %vm440 = vcmp.eq.f32.partialorder %v439, 8.507059e+37
        %v441 = vand.u32 %v408, 2147483648
        %v442 = vor.u32 1.1754944e-38, %v441
        %v443 = vsel %vm440, %v442, %v438
        %v444 = vmul.f32 1.0, %v443
        %v445 = vrcp.pop %v409
        %v446 = vmul.f32 %v409, %v445
        %v447 = vsub.f32 1.0, %v446
        %v448 = vmul.f32 %v445, %v447
        %v449 = vadd.f32 %v445, %v448
        %vm450 = vweird.f32 %v409
        %vm451 = vweird.f32 %v445
        %vm452 = vmor %vm450, %vm451
        %v453 = vsel %vm452, %v445, %v449
        %v454 = vand.u32 2147483647, %v409
        %vm455 = vcmp.eq.f32.partialorder %v454, 8.507059e+37
        %v456 = vand.u32 %v409, 2147483648
        %v457 = vor.u32 1.1754944e-38, %v456
        %v458 = vsel %vm455, %v457, %v453
        %v459 = vmul.f32 1.0, %v458
        %v460 = vrcp.pop %v410
        %v461 = vmul.f32 %v410, %v460
        %v462 = vsub.f32 1.0, %v461
        %v463 = vmul.f32 %v460, %v462
        %v464 = vadd.f32 %v460, %v463
        %vm465 = vweird.f32 %v410
        %vm466 = vweird.f32 %v460
        %vm467 = vmor %vm465, %vm466
        %v468 = vsel %vm467, %v460, %v464
        %v469 = vand.u32 2147483647, %v410
        %vm470 = vcmp.eq.f32.partialorder %v469, 8.507059e+37
        %v471 = vand.u32 %v410, 2147483648
        %v472 = vor.u32 1.1754944e-38, %v471
        %v473 = vsel %vm470, %v472, %v468
        %v474 = vmul.f32 1.0, %v473
        %v475 = vrcp.pop %v411
        %v476 = vmul.f32 %v411, %v475
        %v477 = vsub.f32 1.0, %v476
        %v478 = vmul.f32 %v475, %v477
        %v479 = vadd.f32 %v475, %v478
        %vm480 = vweird.f32 %v411
        %vm481 = vweird.f32 %v475
        %vm482 = vmor %vm480, %vm481
        %v483 = vsel %vm482, %v475, %v479
        %v484 = vand.u32 2147483647, %v411
        %vm485 = vcmp.eq.f32.partialorder %v484, 8.507059e+37
        %v486 = vand.u32 %v411, 2147483648
        %v487 = vor.u32 1.1754944e-38, %v486
        %v488 = vsel %vm485, %v487, %v483
        %v489 = vmul.f32 1.0, %v488
        %v490 = vrcp.pop %v412
        %v491 = vmul.f32 %v412, %v490
        %v492 = vsub.f32 1.0, %v491
        %v493 = vmul.f32 %v490, %v492
        %v494 = vadd.f32 %v490, %v493
        %vm495 = vweird.f32 %v412
        %vm496 = vweird.f32 %v490
        %vm497 = vmor %vm495, %vm496
        %v498 = vsel %vm497, %v490, %v494
        %v499 = vand.u32 2147483647, %v412
        %vm500 = vcmp.eq.f32.partialorder %v499, 8.507059e+37
        %v501 = vand.u32 %v412, 2147483648
        %v502 = vor.u32 1.1754944e-38, %v501
        %v503 = vsel %vm500, %v502, %v498
        %v504 = vmul.f32 1.0, %v503
        %v505 = vrcp.pop %v413
        %v506 = vmul.f32 %v413, %v505
        %v507 = vsub.f32 1.0, %v506
        %v508 = vmul.f32 %v505, %v507
        %v509 = vadd.f32 %v505, %v508
        %vm510 = vweird.f32 %v413
        %vm511 = vweird.f32 %v505
        %vm512 = vmor %vm510, %vm511
        %v513 = vsel %vm512, %v505, %v509
        %v514 = vand.u32 2147483647, %v413
        %vm515 = vcmp.eq.f32.partialorder %v514, 8.507059e+37
        %v516 = vand.u32 %v413, 2147483648
        %v517 = vor.u32 1.1754944e-38, %v516
        %v518 = vsel %vm515, %v517, %v513
        %v519 = vmul.f32 1.0, %v518
        %v520 = vrcp.pop %v414
        %v521 = vmul.f32 %v414, %v520
        %v522 = vsub.f32 1.0, %v521
        %v523 = vmul.f32 %v520, %v522
        %v524 = vadd.f32 %v520, %v523
        %vm525 = vweird.f32 %v414
        %vm526 = vweird.f32 %v520
        %vm527 = vmor %vm525, %vm526
        %v528 = vsel %vm527, %v520, %v524
        %v529 = vand.u32 2147483647, %v414
        %vm530 = vcmp.eq.f32.partialorder %v529, 8.507059e+37
        %v531 = vand.u32 %v414, 2147483648
        %v532 = vor.u32 1.1754944e-38, %v531
        %v533 = vsel %vm530, %v532, %v528
        %v534 = vmul.f32 1.0, %v533
        %v539 = vunpack.c.l.b16 %v306
        %v540 = vunpack.c.l.b16 %v307
        %v541 = vunpack.c.l.b16 %v308
        %v542 = vunpack.c.l.b16 %v309
        %v543 = vpack.c.b16 %v540, %v539
        %v544 = vpack.c.b16 %v542, %v541
        %v549 = vunpack.c.l.b16 %v314
        %v550 = vunpack.c.h.b16 %v314
        %v551 = vunpack.c.l.b16 %v315
        %v552 = vunpack.c.h.b16 %v315
        %v553 = vunpack.c.l.b16 %v316
        %v554 = vunpack.c.h.b16 %v316
        %v555 = vunpack.c.l.b16 %v317
        %v556 = vunpack.c.h.b16 %v317
        %v557 = vpack.c.b16 %v551, %v549
        %v558 = vpack.c.b16 %v552, %v550
        %v559 = vpack.c.b16 %v555, %v553
        %v560 = vpack.c.b16 %v556, %v554
        %vm565 = vcmask 261120
        %v567 = vsel %vm565, %v543, 0
        %v570 = vsel %vm565, %v544, 0
        %572 = vmatpush.bf16.msra.mxu0 0
        %573 = vmatpush.bf16.msra.mxu0 0
        %574 = vmatpush.bf16.msra.mxu0 0
        %575 = vmatpush.bf16.msra.mxu0 0
        %576 = vmatpush.bf16.msra.mxu0 0
        %577 = vmatpush.bf16.msra.mxu0 0
        %578 = vmatpush.bf16.msra.mxu0 %v559
        %579 = vmatpush.bf16.msra.mxu0 %v557
        %580 = vmatmul.bf16.gmra.mxu0 %v567
        %v581 = vpop.f32.mrf.mxu0
        %v582 = vadd.f32 0.0, %v581
        %v583 = vpop.f32.mrf.mxu0
        %v584 = vadd.f32 0.0, %v583
        %585 = vmatmul.bf16.gmra.mxu0 %v570
        %v586 = vpop.f32.mrf.mxu0
        %v587 = vadd.f32 0.0, %v586
        %v588 = vpop.f32.mrf.mxu0
        %v589 = vadd.f32 0.0, %v588
        %590 = vdwg.mxu0
        %591 = vmatpush.bf16.msra.mxu0 0
        %592 = vmatpush.bf16.msra.mxu0 0
        %593 = vmatpush.bf16.msra.mxu0 0
        %594 = vmatpush.bf16.msra.mxu0 0
        %595 = vmatpush.bf16.msra.mxu0 0
        %596 = vmatpush.bf16.msra.mxu0 0
        %597 = vmatpush.bf16.msra.mxu0 %v560
        %598 = vmatpush.bf16.msra.mxu0 %v558
        %599 = vmatmul.bf16.gmra.mxu0 %v567
        %v600 = vpop.f32.mrf.mxu0
        %v601 = vadd.f32 0.0, %v600
        %v602 = vpop.f32.mrf.mxu0
        %v603 = vadd.f32 0.0, %v602
        %604 = vmatmul.bf16.gmra.mxu0 %v570
        %v605 = vpop.f32.mrf.mxu0
        %v606 = vadd.f32 0.0, %v605
        %v607 = vpop.f32.mrf.mxu0
        %v608 = vadd.f32 0.0, %v607
        %609 = vdwg.mxu0
        %v610 = vmul.f32 %v582, %v429
        %v611 = vmul.f32 %v601, %v444
        %v612 = vmul.f32 %v584, %v459
        %v613 = vmul.f32 %v603, %v474
        %v614 = vmul.f32 %v587, %v489
        %v615 = vmul.f32 %v606, %v504
        %v616 = vmul.f32 %v589, %v519
        %v617 = vmul.f32 %v608, %v534
        %v618 = vpack.c.bf16 %v612, %v610
        %v619 = vpack.c.bf16 %v613, %v611
        %v620 = vpack.c.bf16 %v616, %v614
        %v621 = vpack.c.bf16 %v617, %v615
        %v626 = vunpack.c.l.b16 %v310
        %v627 = vunpack.c.l.b16 %v311
        %v628 = vunpack.c.l.b16 %v312
        %v629 = vunpack.c.l.b16 %v313
        %v630 = vpack.c.b16 %v627, %v626
        %v631 = vpack.c.b16 %v629, %v628
        %v633 = vsel %vm565, %v630, 0
        %v636 = vsel %vm565, %v631, 0
        %638 = vmatpush.bf16.msra.mxu0 0
        %639 = vmatpush.bf16.msra.mxu0 0
        %640 = vmatpush.bf16.msra.mxu0 0
        %641 = vmatpush.bf16.msra.mxu0 0
        %642 = vmatpush.bf16.msra.mxu0 0
        %643 = vmatpush.bf16.msra.mxu0 0
        %644 = vmatpush.bf16.msra.mxu0 %v620
        %645 = vmatpush.bf16.msra.mxu0 %v618
        %646 = vmatmul.bf16.gmra.mxu0 %v633
        %v647 = vpop.f32.mrf.mxu0
        %v648 = vadd.f32 0.0, %v647
        %v649 = vpop.f32.mrf.mxu0
        %v650 = vadd.f32 0.0, %v649
        %651 = vmatmul.bf16.gmra.mxu0 %v636
        %v652 = vpop.f32.mrf.mxu0
        %v653 = vadd.f32 0.0, %v652
        %v654 = vpop.f32.mrf.mxu0
        %v655 = vadd.f32 0.0, %v654
        %656 = vdwg.mxu0
        %657 = vmatpush.bf16.msra.mxu0 0
        %658 = vmatpush.bf16.msra.mxu0 0
        %659 = vmatpush.bf16.msra.mxu0 0
        %660 = vmatpush.bf16.msra.mxu0 0
        %661 = vmatpush.bf16.msra.mxu0 0
        %662 = vmatpush.bf16.msra.mxu0 0
        %663 = vmatpush.bf16.msra.mxu0 %v621
        %664 = vmatpush.bf16.msra.mxu0 %v619
        %665 = vmatmul.bf16.gmra.mxu0 %v633
        %v666 = vpop.f32.mrf.mxu0
        %v667 = vadd.f32 0.0, %v666
        %v668 = vpop.f32.mrf.mxu0
        %v669 = vadd.f32 0.0, %v668
        %670 = vmatmul.bf16.gmra.mxu0 %v636
        %v671 = vpop.f32.mrf.mxu0
        %v672 = vadd.f32 0.0, %v671
        %v673 = vpop.f32.mrf.mxu0
        %v674 = vadd.f32 0.0, %v673
        %675 = vdwg.mxu0
        %v676 = vpack.c.bf16 %v667, %v648
        %v677 = vpack.c.bf16 %v669, %v650
        %v678 = vpack.c.bf16 %v672, %v653
        %v679 = vpack.c.bf16 %v674, %v655
        %680 = vst [vmem:[%s300] sm:$0xff] %v676
        %681 = vst [vmem:[%s300 + $0x8] sm:$0xff] %v677
        %682 = vst [vmem:[%s300 + $0x10] sm:$0xff] %v678
        %683 = vst [vmem:[%s300 + $0x18] sm:$0xff] %v679
        %s684 = sand.u32 %s148, 1
        %s685 = scalar_lea.sflag [#allocation4], %s684
        %s686 = sand.u32 %s148, 1
        %s687 = smul.addr %s686, 32
        %s688 = scalar_lea.vmem [#allocation8], %s687
        // Predicated region
        $region53: #{tpu_custom_call.1} parent=39 // pred_check
          %p689 = pneg %p158
        $region54: #{tpu_custom_call.1} parent=39 // pred_check_branch
          %691 = sbr.rel (%p689) target = $region56
        $region55: #{tpu_custom_call.1} parent=39 // pred_region
          %693 = vsyncadd %s685, 0
          %s694 = smul.addr %s25, 8
          %s695 = smul.addr %s694, 4
          %s696 = scalar_lea.hbm %s5, %s695
          %s697 = sshll.u32 %s688, 4
          %s698 = int_to_ptr.vmem [resolvable:$true] %s697
          %s699 = sshll.u32 %s696, 4
          %s700 = int_to_ptr.hbm [resolvable:$true] %s699
          %705 = dma.vmem_to_hbm [thread:$0]  %s698, 512, %s700, %s685, 128, 128, 8
        $region56: #{tpu_custom_call.1} parent=39 // pred_fallthru
          _
      $region40: #{tpu_custom_call.1} parent=5 // pred_fallthru
        _
      %p706 = scmp.le.s32.totalorder 2, %s20
      // Predicated region
      $region57: #{tpu_custom_call.1} parent=5 // pred_check
        %p707 = pneg %p706
      $region58: #{tpu_custom_call.1} parent=5 // pred_check_branch
        %709 = sbr.rel (%p707) target = $region60
      $region59: #{tpu_custom_call.1} parent=5 // pred_region
        %s710 = ssub.s32 %s20, 2
        // Predicated region
        $region61: #{tpu_custom_call.1} parent=59 // pred_check
          %p711 = pneg %p164
        $region62: #{tpu_custom_call.1} parent=59 // pred_check_branch
          %713 = sbr.rel (%p711) target = $region64
        $region63: #{tpu_custom_call.1} parent=59 // pred_region
          %s714 = sand.u32 %s149, 1
          %s715 = scalar_lea.sflag [#allocation4], %s714
          %s716 = sand.u32 %s149, 1
          %s717 = smul.addr %s716, 32
          %s718 = scalar_lea.vmem [#allocation8], %s717
          %720 = dma.done %s715, 512
        $region64: #{tpu_custom_call.1} parent=59 // pred_fallthru
          _
      $region60: #{tpu_custom_call.1} parent=5 // pred_fallthru
        _
    $region6: #{tpu_custom_call.1} parent=1 // loop_footer
      %s24 = sadd.s32 1, %s20
    $region7: #{tpu_custom_call.1} parent=1 // loop_footer_branch
      %19 = sbr.rel target = $region3
    $region8: #{tpu_custom_call.1} parent=1 // loop_exit
      _
    %721 = vsyncpa [#allocation3], 1
    %s722 = scalar_lea.sflag [#allocation3], 1
    %723 = vsyncpa %s722, 1
    %724 = vsyncpa [#allocation6], 1
    %s725 = scalar_lea.sflag [#allocation6], 1
    %726 = vsyncpa %s725, 1
    %727 = vsyncpa [#allocation4], 1
    %s728 = scalar_lea.sflag [#allocation4], 1
    %729 = vsyncpa %s728, 1

</llo_original>
